<compile_context>
chip_gen: v5e
topology: v5e:2x2
jax: 0.10.0
libtpu: 0.0.40
codegen_flags: <defaults>
</compile_context>

<pallas_src>
import functools

import numpy as np
import jax
import jax.numpy as jnp
from jax import lax
from jax.experimental import pallas as pl
from jax.experimental.pallas import tpu as pltpu


def _place_scalars(a, b, shape):
    """Return a `shape`-sized f32 block with `a` at [..., 0, 0] and `b` at
    [..., 0, 1], zeros elsewhere (lane-dense accumulator row)."""
    lane = lax.broadcasted_iota(jnp.int32, shape, len(shape) - 1)
    sub = lax.broadcasted_iota(jnp.int32, shape, len(shape) - 2)
    zero = jnp.zeros(shape, jnp.float32)
    out = jnp.where((sub == 0) & (lane == 0), a, zero)
    out = jnp.where((sub == 0) & (lane == 1), b, out)
    return out


def _l1_grad_kernel(pred_ref, target_ref, mask_ref, out_ref,
                    carry_d_ref, carry_m_ref, *, step):
    h_tile = pl.program_id(1)

    p = pred_ref[...].astype(jnp.float32)    # (1, TH, W)
    t = target_ref[...].astype(jnp.float32)
    m = mask_ref[...].astype(jnp.float32)

    d = (p - t) * m
    th = d.shape[1]
    w = d.shape[2]

    # Horizontal gradient (W is never tiled, so fully inside the block).
    h_grad = jnp.abs(d[:, :, : w - step] - d[:, :, step:])
    h_msk = m[:, :, : w - step] * m[:, :, step:]
    grad_sum = jnp.sum(h_grad * h_msk)

    # Vertical gradient for pairs fully inside this H-tile.
    v_grad = jnp.abs(d[:, : th - step, :] - d[:, step:, :])
    v_msk = m[:, : th - step, :] * m[:, step:, :]
    grad_sum = grad_sum + jnp.sum(v_grad * v_msk)

    mask_sum = jnp.sum(m)

    # Init the resident per-plane accumulator at the start of the reduction.
    @pl.when(h_tile == 0)
    def _():
        out_ref[...] = jnp.zeros_like(out_ref)

    out_ref[...] += _place_scalars(grad_sum, mask_sum, out_ref.shape)

    # Vertical pairs that straddle the previous tile boundary: previous tile's
    # last `step` rows (carried in VMEM scratch) vs this tile's first `step`.
    @pl.when(h_tile > 0)
    def _():
        bd_grad = jnp.abs(carry_d_ref[...] - d[:, :step, :])
        bd_msk = carry_m_ref[...] * m[:, :step, :]
        out_ref[...] += _place_scalars(jnp.sum(bd_grad * bd_msk), 0.0,
                                       out_ref.shape)

    # Update the carry with this tile's last `step` rows.
    carry_d_ref[...] = d[:, th - step:, :]
    carry_m_ref[...] = m[:, th - step:, :]


def _pick_tile_h(H, W, step, budget_bytes=8 << 20):
    """Largest H-tile (multiple of 8, dividing H, > step) whose 3 double-
    buffered f32 input slabs fit the VMEM budget; else fall back."""
    candidates = [th for th in range(8, H + 1, 8) if H % th == 0 and th > step]
    if not candidates:
        return H
    fitting = [th for th in candidates if 3 * 2 * th * W * 4 <= budget_bytes]
    return max(fitting) if fitting else min(candidates)


def l1_image_gradient_loss(pred, target, mask, *, step=2, tile_h=None):
    assert pred.shape == target.shape == mask.shape
    B, C, H, W = pred.shape
    assert step < H and step < W, "step must be smaller than H and W"
    BC = B * C

    if tile_h is None:
        tile_h = _pick_tile_h(H, W, step)
    # Safety fallbacks: tile must divide H, be > step, and be a multiple of 8
    # (or simply the full height).
    if (H % tile_h != 0) or (tile_h <= step) or (tile_h != H and tile_h % 8 != 0):
        tile_h = H
    num_h = H // tile_h

    p2 = pred.reshape(BC, H, W)
    t2 = target.reshape(BC, H, W)
    m2 = mask.reshape(BC, H, W)

    in_spec = pl.BlockSpec((1, tile_h, W), lambda bc, h: (bc, h, 0))
    # Lane-dense per-plane accumulator: [bc, 0, 0] = masked-gradient sum,
    # [bc, 0, 1] = mask sum.  Resident across the H-tile reduction axis.
    out_spec = pl.BlockSpec((1, 8, 128), lambda bc, h: (bc, 0, 0))

    partials = pl.pallas_call(
        functools.partial(_l1_grad_kernel, step=step),
        out_shape=jax.ShapeDtypeStruct((BC, 8, 128), jnp.float32),
        grid_spec=pltpu.PrefetchScalarGridSpec(
            num_scalar_prefetch=0,
            grid=(BC, num_h),
            in_specs=[in_spec, in_spec, in_spec],
            out_specs=out_spec,
            scratch_shapes=[
                pltpu.VMEM((1, step, W), jnp.float32),  # carry: diff rows
                pltpu.VMEM((1, step, W), jnp.float32),  # carry: mask rows
            ],
        ),
        compiler_params=pltpu.CompilerParams(
            dimension_semantics=("parallel", "arbitrary")),
    )(p2, t2, m2)

    grad_sum = jnp.sum(partials[:, 0, 0])
    n = jnp.sum(partials[:, 0, 1])
    # Exact divide (do NOT use approx reciprocal: N can be tiny).
    return (grad_sum / 2.0) / (n + 1e-6)


def _reference_loss(pred, target, mask, step=2):
    """Pure-JAX mirror of the PyTorch forward, for verification."""
    n = jnp.sum(mask)
    diff = (pred - target) * mask
    v_grad = jnp.abs(diff[:, :, :-step, :] - diff[:, :, step:, :])
    v_msk = mask[:, :, :-step, :] * mask[:, :, step:, :]
    v_grad = v_grad * v_msk
    h_grad = jnp.abs(diff[:, :, :, :-step] - diff[:, :, :, step:])
    h_msk = mask[:, :, :, :-step] * mask[:, :, :, step:]
    h_grad = h_grad * h_msk
    return (jnp.sum(h_grad) + jnp.sum(v_grad)) / 2.0 / (n + 1e-6)


if __name__ == "__main__":
    # Small image-like shapes: NCHW with 3 channels, step=2 (module default).
    B, C, H, W = 2, 3, 16, 16
    step = 2

    key = jax.random.PRNGKey(0)
    k1, k2, k3 = jax.random.split(key, 3)
    pred = jax.random.uniform(k1, (B, C, H, W), dtype=jnp.float32)
    target = jax.random.uniform(k2, (B, C, H, W), dtype=jnp.float32)
    mask = (jax.random.uniform(k3, (B, C, H, W)) > 0.3).astype(jnp.float32)

    # 1) Explicit H-tiling (tile_h=8 < H) — exercises the cross-tile vertical
    #    carry path.
    out_tiled = jax.block_until_ready(
        l1_image_gradient_loss(pred, target, mask, step=step, tile_h=8))
    # 2) Auto-picked (largest fitting) tile — the production configuration.
    out_auto = jax.block_until_ready(
        l1_image_gradient_loss(pred, target, mask, step=step))

    ref = _reference_loss(pred, target, mask, step=step)
    np.testing.assert_allclose(np.asarray(out_tiled), np.asarray(ref),
                               rtol=1e-5, atol=1e-5)
    np.testing.assert_allclose(np.asarray(out_auto), np.asarray(ref),
                               rtol=1e-5, atol=1e-5)
    print("KERNEL_OK")
</pallas_src>

<mosaic_0001>
module attributes {stable_mosaic.version = 11 : i64} {
  func.func @_l1_grad_kernel(%arg0: i32, %arg1: i32, %arg2: memref<1x8x16xf32, #tpu.memory_space<vmem>>, %arg3: memref<1x8x16xf32, #tpu.memory_space<vmem>>, %arg4: memref<1x8x16xf32, #tpu.memory_space<vmem>>, %arg5: memref<1x8x128xf32, #tpu.memory_space<vmem>>, %arg6: memref<1x2x16xf32, #tpu.memory_space<vmem>>, %arg7: memref<1x2x16xf32, #tpu.memory_space<vmem>>) attributes {dimension_semantics = [#tpu.dimension_semantics<parallel>, #tpu.dimension_semantics<arbitrary>], iteration_bounds = array<i64: 6, 2>, scalar_prefetch = 0 : i64, scratch_operands = 2 : i64, tpu.core_type = #tpu.core_type<tc>, window_params = [{transform_indices = @transform_0, window_bounds = array<i64: 1, 8, 16>}, {transform_indices = @transform_1, window_bounds = array<i64: 1, 8, 16>}, {transform_indices = @transform_2, window_bounds = array<i64: 1, 8, 16>}, {transform_indices = @transform_3, window_bounds = array<i64: 1, 8, 128>}]} {
    %c0 = arith.constant 0 : index
    %c0_0 = arith.constant 0 : index
    %c0_1 = arith.constant 0 : index
    %0 = vector.load %arg2[%c0, %c0_0, %c0_1] : memref<1x8x16xf32, #tpu.memory_space<vmem>>, vector<1x8x16xf32>
    %c0_2 = arith.constant 0 : index
    %c0_3 = arith.constant 0 : index
    %c0_4 = arith.constant 0 : index
    %1 = vector.load %arg3[%c0_2, %c0_3, %c0_4] : memref<1x8x16xf32, #tpu.memory_space<vmem>>, vector<1x8x16xf32>
    %c0_5 = arith.constant 0 : index
    %c0_6 = arith.constant 0 : index
    %c0_7 = arith.constant 0 : index
    %2 = vector.load %arg4[%c0_5, %c0_6, %c0_7] : memref<1x8x16xf32, #tpu.memory_space<vmem>>, vector<1x8x16xf32>
    %3 = arith.subf %0, %1 : vector<1x8x16xf32>
    %4 = arith.mulf %3, %2 : vector<1x8x16xf32>
    %5 = vector.extract_strided_slice %4 {offsets = [0, 0, 0], sizes = [1, 8, 14], strides = [1, 1, 1]} : vector<1x8x16xf32> to vector<1x8x14xf32>
    %6 = vector.extract_strided_slice %4 {offsets = [0, 0, 2], sizes = [1, 8, 14], strides = [1, 1, 1]} : vector<1x8x16xf32> to vector<1x8x14xf32>
    %7 = arith.subf %5, %6 : vector<1x8x14xf32>
    %8 = math.absf %7 : vector<1x8x14xf32>
    %9 = vector.extract_strided_slice %2 {offsets = [0, 0, 0], sizes = [1, 8, 14], strides = [1, 1, 1]} : vector<1x8x16xf32> to vector<1x8x14xf32>
    %10 = vector.extract_strided_slice %2 {offsets = [0, 0, 2], sizes = [1, 8, 14], strides = [1, 1, 1]} : vector<1x8x16xf32> to vector<1x8x14xf32>
    %11 = arith.mulf %9, %10 : vector<1x8x14xf32>
    %12 = arith.mulf %8, %11 : vector<1x8x14xf32>
    %13 = vector.shape_cast %12 : vector<1x8x14xf32> to vector<1x1x8x14xf32>
    %cst = arith.constant dense<0.000000e+00> : vector<1xf32>
    %14 = vector.multi_reduction <add>, %13, %cst [1, 2, 3] : vector<1x1x8x14xf32> to vector<1xf32>
    %15 = vector.shape_cast %14 : vector<1xf32> to vector<1x1x1x1xf32>
    %16 = vector.extract %15[0, 0, 0, 0] : f32 from vector<1x1x1x1xf32>
    %17 = vector.extract_strided_slice %4 {offsets = [0, 0, 0], sizes = [1, 6, 16], strides = [1, 1, 1]} : vector<1x8x16xf32> to vector<1x6x16xf32>
    %18 = vector.extract_strided_slice %4 {offsets = [0, 2, 0], sizes = [1, 6, 16], strides = [1, 1, 1]} : vector<1x8x16xf32> to vector<1x6x16xf32>
    %19 = arith.subf %17, %18 : vector<1x6x16xf32>
    %20 = math.absf %19 : vector<1x6x16xf32>
    %21 = vector.extract_strided_slice %2 {offsets = [0, 0, 0], sizes = [1, 6, 16], strides = [1, 1, 1]} : vector<1x8x16xf32> to vector<1x6x16xf32>
    %22 = vector.extract_strided_slice %2 {offsets = [0, 2, 0], sizes = [1, 6, 16], strides = [1, 1, 1]} : vector<1x8x16xf32> to vector<1x6x16xf32>
    %23 = arith.mulf %21, %22 : vector<1x6x16xf32>
    %24 = arith.mulf %20, %23 : vector<1x6x16xf32>
    %25 = vector.shape_cast %24 : vector<1x6x16xf32> to vector<1x1x6x16xf32>
    %cst_8 = arith.constant dense<0.000000e+00> : vector<1xf32>
    %26 = vector.multi_reduction <add>, %25, %cst_8 [1, 2, 3] : vector<1x1x6x16xf32> to vector<1xf32>
    %27 = vector.shape_cast %26 : vector<1xf32> to vector<1x1x1x1xf32>
    %28 = vector.extract %27[0, 0, 0, 0] : f32 from vector<1x1x1x1xf32>
    %29 = arith.addf %16, %28 : f32
    %30 = vector.shape_cast %2 : vector<1x8x16xf32> to vector<1x1x8x16xf32>
    %cst_9 = arith.constant dense<0.000000e+00> : vector<1xf32>
    %31 = vector.multi_reduction <add>, %30, %cst_9 [1, 2, 3] : vector<1x1x8x16xf32> to vector<1xf32>
    %32 = vector.shape_cast %31 : vector<1xf32> to vector<1x1x1x1xf32>
    %33 = vector.extract %32[0, 0, 0, 0] : f32 from vector<1x1x1x1xf32>
    %c0_i32 = arith.constant 0 : i32
    %34 = arith.cmpi eq, %arg1, %c0_i32 : i32
    %35 = arith.extui %34 : i1 to i32
    %c0_i32_10 = arith.constant 0 : i32
    %36 = arith.cmpi ne, %35, %c0_i32_10 : i32
    scf.if %36 {
      %cst_29 = arith.constant 0.000000e+00 : f32
      %64 = vector.broadcast %cst_29 : f32 to vector<1x8x128xf32>
      %c0_30 = arith.constant 0 : index
      %c0_31 = arith.constant 0 : index
      %c0_32 = arith.constant 0 : index
      %65 = vector.load %arg5[%c0_30, %c0_31, %c0_32] : memref<1x8x128xf32, #tpu.memory_space<vmem>>, vector<1x8x128xf32>
      tpu.vector_store %arg5[%c0_30, %c0_31, %c0_32], %64 {strides = array<i32>} : memref<1x8x128xf32, #tpu.memory_space<vmem>>, vector<1x8x128xf32>,
    } else {
    }
    %c0_11 = arith.constant 0 : index
    %c0_12 = arith.constant 0 : index
    %c0_13 = arith.constant 0 : index
    %37 = vector.load %arg5[%c0_11, %c0_12, %c0_13] : memref<1x8x128xf32, #tpu.memory_space<vmem>>, vector<1x8x128xf32>
    %38 = tpu.iota {dimensions = array<i32: 2>} : vector<1x8x128xi32>
    %39 = tpu.iota {dimensions = array<i32: 1>} : vector<1x8x128xi32>
    %cst_14 = arith.constant 0.000000e+00 : f32
    %40 = vector.broadcast %cst_14 : f32 to vector<1x8x128xf32>
    %c0_i32_15 = arith.constant 0 : i32
    %41 = vector.broadcast %c0_i32_15 : i32 to vector<1x8x128xi32>
    %42 = arith.cmpi eq, %39, %41 : vector<1x8x128xi32>
    %c0_i32_16 = arith.constant 0 : i32
    %43 = vector.broadcast %c0_i32_16 : i32 to vector<1x8x128xi32>
    %44 = arith.cmpi eq, %38, %43 : vector<1x8x128xi32>
    %45 = arith.andi %42, %44 : vector<1x8x128xi1>
    %46 = vector.broadcast %29 : f32 to vector<1x8x128xf32>
    %47 = arith.select %45, %46, %40 : vector<1x8x128xi1>, vector<1x8x128xf32>
    %c0_i32_17 = arith.constant 0 : i32
    %48 = vector.broadcast %c0_i32_17 : i32 to vector<1x8x128xi32>
    %49 = arith.cmpi eq, %39, %48 : vector<1x8x128xi32>
    %c1_i32 = arith.constant 1 : i32
    %50 = vector.broadcast %c1_i32 : i32 to vector<1x8x128xi32>
    %51 = arith.cmpi eq, %38, %50 : vector<1x8x128xi32>
    %52 = arith.andi %49, %51 : vector<1x8x128xi1>
    %53 = vector.broadcast %33 : f32 to vector<1x8x128xf32>
    %54 = arith.select %52, %53, %47 : vector<1x8x128xi1>, vector<1x8x128xf32>
    %55 = arith.addf %37, %54 : vector<1x8x128xf32>
    %c0_18 = arith.constant 0 : index
    %c0_19 = arith.constant 0 : index
    %c0_20 = arith.constant 0 : index
    %56 = vector.load %arg5[%c0_18, %c0_19, %c0_20] : memref<1x8x128xf32, #tpu.memory_space<vmem>>, vector<1x8x128xf32>
    tpu.vector_store %arg5[%c0_18, %c0_19, %c0_20], %55 {strides = array<i32>} : memref<1x8x128xf32, #tpu.memory_space<vmem>>, vector<1x8x128xf32>,
    %c0_i32_21 = arith.constant 0 : i32
    %57 = arith.cmpi sgt, %arg1, %c0_i32_21 : i32
    %58 = arith.extui %57 : i1 to i32
    %c0_i32_22 = arith.constant 0 : i32
    %59 = arith.cmpi ne, %58, %c0_i32_22 : i32
    scf.if %59 {
      %c0_29 = arith.constant 0 : index
      %c0_30 = arith.constant 0 : index
      %c0_31 = arith.constant 0 : index
      %64 = vector.load %arg6[%c0_29, %c0_30, %c0_31] : memref<1x2x16xf32, #tpu.memory_space<vmem>>, vector<1x2x16xf32>
      %65 = vector.extract_strided_slice %4 {offsets = [0, 0, 0], sizes = [1, 2, 16], strides = [1, 1, 1]} : vector<1x8x16xf32> to vector<1x2x16xf32>
      %66 = arith.subf %64, %65 : vector<1x2x16xf32>
      %67 = math.absf %66 : vector<1x2x16xf32>
      %c0_32 = arith.constant 0 : index
      %c0_33 = arith.constant 0 : index
      %c0_34 = arith.constant 0 : index
      %68 = vector.load %arg7[%c0_32, %c0_33, %c0_34] : memref<1x2x16xf32, #tpu.memory_space<vmem>>, vector<1x2x16xf32>
      %69 = vector.extract_strided_slice %2 {offsets = [0, 0, 0], sizes = [1, 2, 16], strides = [1, 1, 1]} : vector<1x8x16xf32> to vector<1x2x16xf32>
      %70 = arith.mulf %68, %69 : vector<1x2x16xf32>
      %c0_35 = arith.constant 0 : index
      %c0_36 = arith.constant 0 : index
      %c0_37 = arith.constant 0 : index
      %71 = vector.load %arg5[%c0_35, %c0_36, %c0_37] : memref<1x8x128xf32, #tpu.memory_space<vmem>>, vector<1x8x128xf32>
      %72 = arith.mulf %67, %70 : vector<1x2x16xf32>
      %73 = vector.shape_cast %72 : vector<1x2x16xf32> to vector<1x1x2x16xf32>
      %cst_38 = arith.constant dense<0.000000e+00> : vector<1xf32>
      %74 = vector.multi_reduction <add>, %73, %cst_38 [1, 2, 3] : vector<1x1x2x16xf32> to vector<1xf32>
      %75 = vector.shape_cast %74 : vector<1xf32> to vector<1x1x1x1xf32>
      %76 = vector.extract %75[0, 0, 0, 0] : f32 from vector<1x1x1x1xf32>
      %77 = tpu.iota {dimensions = array<i32: 2>} : vector<1x8x128xi32>
      %78 = tpu.iota {dimensions = array<i32: 1>} : vector<1x8x128xi32>
      %cst_39 = arith.constant 0.000000e+00 : f32
      %79 = vector.broadcast %cst_39 : f32 to vector<1x8x128xf32>
      %c0_i32_40 = arith.constant 0 : i32
      %80 = vector.broadcast %c0_i32_40 : i32 to vector<1x8x128xi32>
      %81 = arith.cmpi eq, %78, %80 : vector<1x8x128xi32>
      %c0_i32_41 = arith.constant 0 : i32
      %82 = vector.broadcast %c0_i32_41 : i32 to vector<1x8x128xi32>
      %83 = arith.cmpi eq, %77, %82 : vector<1x8x128xi32>
      %84 = arith.andi %81, %83 : vector<1x8x128xi1>
      %85 = vector.broadcast %76 : f32 to vector<1x8x128xf32>
      %86 = arith.select %84, %85, %79 : vector<1x8x128xi1>, vector<1x8x128xf32>
      %c0_i32_42 = arith.constant 0 : i32
      %87 = vector.broadcast %c0_i32_42 : i32 to vector<1x8x128xi32>
      %88 = arith.cmpi eq, %78, %87 : vector<1x8x128xi32>
      %c1_i32_43 = arith.constant 1 : i32
      %89 = vector.broadcast %c1_i32_43 : i32 to vector<1x8x128xi32>
      %90 = arith.cmpi eq, %77, %89 : vector<1x8x128xi32>
      %91 = arith.andi %88, %90 : vector<1x8x128xi1>
      %cst_44 = arith.constant 0.000000e+00 : f32
      %92 = vector.broadcast %cst_44 : f32 to vector<1x8x128xf32>
      %93 = arith.select %91, %92, %86 : vector<1x8x128xi1>, vector<1x8x128xf32>
      %94 = arith.addf %71, %93 : vector<1x8x128xf32>
      %c0_45 = arith.constant 0 : index
      %c0_46 = arith.constant 0 : index
      %c0_47 = arith.constant 0 : index
      %95 = vector.load %arg5[%c0_45, %c0_46, %c0_47] : memref<1x8x128xf32, #tpu.memory_space<vmem>>, vector<1x8x128xf32>
      tpu.vector_store %arg5[%c0_45, %c0_46, %c0_47], %94 {strides = array<i32>} : memref<1x8x128xf32, #tpu.memory_space<vmem>>, vector<1x8x128xf32>,
    } else {
    }
    %60 = vector.extract_strided_slice %4 {offsets = [0, 6, 0], sizes = [1, 2, 16], strides = [1, 1, 1]} : vector<1x8x16xf32> to vector<1x2x16xf32>
    %c0_23 = arith.constant 0 : index
    %c0_24 = arith.constant 0 : index
    %c0_25 = arith.constant 0 : index
    %61 = vector.load %arg6[%c0_23, %c0_24, %c0_25] : memref<1x2x16xf32, #tpu.memory_space<vmem>>, vector<1x2x16xf32>
    tpu.vector_store %arg6[%c0_23, %c0_24, %c0_25], %60 {strides = array<i32>} : memref<1x2x16xf32, #tpu.memory_space<vmem>>, vector<1x2x16xf32>,
    %62 = vector.extract_strided_slice %2 {offsets = [0, 6, 0], sizes = [1, 2, 16], strides = [1, 1, 1]} : vector<1x8x16xf32> to vector<1x2x16xf32>
    %c0_26 = arith.constant 0 : index
    %c0_27 = arith.constant 0 : index
    %c0_28 = arith.constant 0 : index
    %63 = vector.load %arg7[%c0_26, %c0_27, %c0_28] : memref<1x2x16xf32, #tpu.memory_space<vmem>>, vector<1x2x16xf32>
    tpu.vector_store %arg7[%c0_26, %c0_27, %c0_28], %62 {strides = array<i32>} : memref<1x2x16xf32, #tpu.memory_space<vmem>>, vector<1x2x16xf32>,
    return
  }
  func.func @transform_0(%arg0: i32, %arg1: i32) -> (i32, i32, i32) {
    %c0_i32 = arith.constant 0 : i32
    %c0_i32_0 = arith.constant 0 : i32
    return %arg0, %arg1, %c0_i32 : i32, i32, i32
  }
  func.func @transform_1(%arg0: i32, %arg1: i32) -> (i32, i32, i32) {
    %c0_i32 = arith.constant 0 : i32
    %c0_i32_0 = arith.constant 0 : i32
    return %arg0, %arg1, %c0_i32 : i32, i32, i32
  }
  func.func @transform_2(%arg0: i32, %arg1: i32) -> (i32, i32, i32) {
    %c0_i32 = arith.constant 0 : i32
    %c0_i32_0 = arith.constant 0 : i32
    return %arg0, %arg1, %c0_i32 : i32, i32, i32
  }
  func.func @transform_3(%arg0: i32, %arg1: i32) -> (i32, i32, i32) {
    %c0_i32 = arith.constant 0 : i32
    %c0_i32_0 = arith.constant 0 : i32
    %c0_i32_1 = arith.constant 0 : i32
    return %arg0, %c0_i32, %c0_i32_0 : i32, i32, i32
  }
}

</mosaic_0001>

<llo_original>
// kernel: tpu_custom_call.1
$region0: #{tpu_custom_call.1}
  #allocation0 [shape = 'u32[]', space=smem, size = 0x4, offset = 0x4, fixed_abs, tag = 'smem constant byte address 0x4 - core index']
  #allocation1 [shape = 'u32[72,128]{1,0:T(1,128)}', space=vmem, size = 0x9000, scoped, tag = 'internal scratch']
  #allocation2 [shape = 'f32[1,2,16]{2,1,0:T(2,128)}', space=vmem, size = 0x400, scoped, tag = 'scratch operand']
  #allocation3 [shape = 'f32[1,2,16]{2,1,0:T(2,128)}', space=vmem, size = 0x400, scoped, tag = 'scratch operand']
  %s0 = inlined_call_operand.hbm [shape: f32[6,16,16], index: 0, kind: input, shape index: {}]
  %s1 = inlined_call_operand.hbm [shape: f32[6,16,16], index: 1, kind: input, shape index: {}]
  %s2 = inlined_call_operand.hbm [shape: f32[6,16,16], index: 2, kind: input, shape index: {}]
  %s3 = inlined_call_operand.hbm [shape: f32[6,8,128], index: 3, kind: output, shape index: {}]
  %s4 = sld [smem:[#allocation0]]
  $region65: #{tpu_custom_call.1} parent=0
    _
  %s6 = ssub.s32 1, %s4
  %s7 = scalar_select 0, %s6, %s4
  $region1: #{tpu_custom_call.1} parent=0
    #allocation4 [shape = 'u8[8192]{0}', space=vmem, size = 0x2000, scoped, tag = 'input window, operand 0']
    #allocation5 [shape = 's32[2]{0}', space=sflag, size = 0x8, scoped, tag = 'scoped memory for tpu_custom_call.1']
    #allocation6 [shape = 's32[2]{0}', space=sflag, size = 0x8, scoped, tag = 'scoped memory for tpu_custom_call.1']
    #allocation7 [shape = 'u8[8192]{0}', space=vmem, size = 0x2000, scoped, tag = 'input window, operand 1']
    #allocation8 [shape = 's32[2]{0}', space=sflag, size = 0x8, scoped, tag = 'scoped memory for tpu_custom_call.1']
    #allocation9 [shape = 'u8[8192]{0}', space=vmem, size = 0x2000, scoped, tag = 'input window, operand 2']
    #allocation10 [shape = 'u8[8192]{0}', space=vmem, size = 0x2000, scoped, tag = 'output window, operand 0']
    %8 = vsyncpa [#allocation5], 0
    %s9 = scalar_lea.sflag [#allocation5], 1
    %10 = vsyncpa %s9, 0
    %11 = vsyncpa [#allocation8], 0
    %s12 = scalar_lea.sflag [#allocation8], 1
    %13 = vsyncpa %s12, 0
    %14 = vsyncpa [#allocation6], 0
    %s15 = scalar_lea.sflag [#allocation6], 1
    %16 = vsyncpa %s15, 0
    loop: start=0, step=1, limit=14
    $region2: #{tpu_custom_call.1} parent=1 // loop_pre_header
      _
    $region3: #{tpu_custom_call.1} parent=1 // loop_header
      %s18 = sphi 0, %s22
      %p19 = scmp.ge.s32.totalorder %s18, 14
      %s25 = sphi 0, %s37
      %s26 = sphi 0, %s33
      %s27 = sphi 0, %s25
      %s28 = sphi 0, %s26
      %s29 = sphi 0, %s27
      %s30 = sphi 0, %s28
      %s42 = sphi 0, %s44
      %s45 = sphi 0, %s42
      %s46 = sphi 0, %s45
      %s62 = sphi 0, %s46
      %s70 = sphi 0, %s72
      %s73 = sphi 0, %s70
      %s74 = sphi 0, %s73
      %s90 = sphi 0, %s74
      %s98 = sphi 0, %s100
      %s101 = sphi 0, %s98
      %s102 = sphi 0, %s101
      %s118 = sphi 0, %s102
      %s124 = sphi 0, %s126
      %s127 = sphi 0, %s124
      %s128 = sphi 0, %s127
      %s144 = sphi 0, %s128
    $region4: #{tpu_custom_call.1} parent=1 // loop_header_branch
      %21 = sbr.rel (%p19) target = $region8
    $region5: #{tpu_custom_call.1} parent=1 // loop_body
      %s23 = ssub.s32 %s18, 1
      %s24 = ssub.s32 %s18, 2
      %s31 = sadd.s32 1, %s26
      %p32 = scmp.ge.s32.totalorder %s31, 2
      %s33 = scalar_select %p32, 0, %s31
      %s34 = sadd.s32 1, %s25
      %s35 = scalar_select %p32, %s34, %s25
      %p36 = scmp.ge.s32.totalorder %s35, 6
      %s37 = scalar_select %p36, 0, %s35
      %s38 = ssub.s32 %s25, %s37
      %s39 = ssub.s32 %s26, %s33
      %s40 = sor.u32 %s38, %s39
      %p41 = scmp.eq.s32.totalorder %s40, 0
      %s43 = sadd.s32 %s42, 1
      %s44 = scalar_select %p41, %s42, %s43
      %p47 = pneg %p41
      %p48 = scmp.eq.s32.totalorder %s18, 11
      %p49 = por %p47, %p48
      %p50 = scmp.ne.s32.totalorder %s42, %s45
      %p51 = scmp.eq.s32.totalorder %s18, 0
      %p52 = por %p50, %p51
      %p53 = scmp.ne.s32.totalorder %s42, %s45
      %p54 = scmp.eq.s32.totalorder %s23, 11
      %p55 = por %p53, %p54
      %p56 = scmp.ne.s32.totalorder %s45, %s46
      %p57 = scmp.eq.s32.totalorder %s23, 0
      %p58 = por %p56, %p57
      %p59 = scmp.ne.s32.totalorder %s45, %s46
      %p60 = scmp.eq.s32.totalorder %s24, 11
      %p61 = por %p59, %p60
      %p63 = scmp.ne.s32.totalorder %s46, %s62
      %p64 = scmp.eq.s32.totalorder %s24, 0
      %p65 = por %p63, %p64
      %s66 = ssub.s32 %s25, %s37
      %s67 = ssub.s32 %s26, %s33
      %s68 = sor.u32 %s66, %s67
      %p69 = scmp.eq.s32.totalorder %s68, 0
      %s71 = sadd.s32 %s70, 1
      %s72 = scalar_select %p69, %s70, %s71
      %p75 = pneg %p69
      %p76 = scmp.eq.s32.totalorder %s18, 11
      %p77 = por %p75, %p76
      %p78 = scmp.ne.s32.totalorder %s70, %s73
      %p79 = scmp.eq.s32.totalorder %s18, 0
      %p80 = por %p78, %p79
      %p81 = scmp.ne.s32.totalorder %s70, %s73
      %p82 = scmp.eq.s32.totalorder %s23, 11
      %p83 = por %p81, %p82
      %p84 = scmp.ne.s32.totalorder %s73, %s74
      %p85 = scmp.eq.s32.totalorder %s23, 0
      %p86 = por %p84, %p85
      %p87 = scmp.ne.s32.totalorder %s73, %s74
      %p88 = scmp.eq.s32.totalorder %s24, 11
      %p89 = por %p87, %p88
      %p91 = scmp.ne.s32.totalorder %s74, %s90
      %p92 = scmp.eq.s32.totalorder %s24, 0
      %p93 = por %p91, %p92
      %s94 = ssub.s32 %s25, %s37
      %s95 = ssub.s32 %s26, %s33
      %s96 = sor.u32 %s94, %s95
      %p97 = scmp.eq.s32.totalorder %s96, 0
      %s99 = sadd.s32 %s98, 1
      %s100 = scalar_select %p97, %s98, %s99
      %p103 = pneg %p97
      %p104 = scmp.eq.s32.totalorder %s18, 11
      %p105 = por %p103, %p104
      %p106 = scmp.ne.s32.totalorder %s98, %s101
      %p107 = scmp.eq.s32.totalorder %s18, 0
      %p108 = por %p106, %p107
      %p109 = scmp.ne.s32.totalorder %s98, %s101
      %p110 = scmp.eq.s32.totalorder %s23, 11
      %p111 = por %p109, %p110
      %p112 = scmp.ne.s32.totalorder %s101, %s102
      %p113 = scmp.eq.s32.totalorder %s23, 0
      %p114 = por %p112, %p113
      %p115 = scmp.ne.s32.totalorder %s101, %s102
      %p116 = scmp.eq.s32.totalorder %s24, 11
      %p117 = por %p115, %p116
      %p119 = scmp.ne.s32.totalorder %s102, %s118
      %p120 = scmp.eq.s32.totalorder %s24, 0
      %p121 = por %p119, %p120
      %s122 = ssub.s32 %s25, %s37
      %p123 = scmp.eq.s32.totalorder %s122, 0
      %s125 = sadd.s32 %s124, 1
      %s126 = scalar_select %p123, %s124, %s125
      %p129 = pneg %p123
      %p130 = scmp.eq.s32.totalorder %s18, 11
      %p131 = por %p129, %p130
      %p132 = scmp.ne.s32.totalorder %s124, %s127
      %p133 = scmp.eq.s32.totalorder %s18, 0
      %p134 = por %p132, %p133
      %p135 = scmp.ne.s32.totalorder %s124, %s127
      %p136 = scmp.eq.s32.totalorder %s23, 11
      %p137 = por %p135, %p136
      %p138 = scmp.ne.s32.totalorder %s127, %s128
      %p139 = scmp.eq.s32.totalorder %s23, 0
      %p140 = por %p138, %p139
      %p141 = scmp.ne.s32.totalorder %s127, %s128
      %p142 = scmp.eq.s32.totalorder %s24, 11
      %p143 = por %p141, %p142
      %p145 = scmp.ne.s32.totalorder %s128, %s144
      %p146 = scmp.eq.s32.totalorder %s24, 0
      %p147 = por %p145, %p146
      %p148 = scmp.le.s32.totalorder 1, %s18
      %p149 = scmp.lt.s32.totalorder %s18, 13
      %p150 = pnand %p148, %p149
      %p151 = pneg %p150
      // Predicated region
      $region9: #{tpu_custom_call.1} parent=5 // pred_check
        _
      $region10: #{tpu_custom_call.1} parent=5 // pred_check_branch
        %153 = sbr.rel (%p150) target = $region12
      $region11: #{tpu_custom_call.1} parent=5 // pred_region
        %s154 = ssub.s32 %s18, 1
      $region12: #{tpu_custom_call.1} parent=5 // pred_fallthru
        _
      %p155 = scmp.lt.s32.totalorder %s18, 12
      // Predicated region
      $region13: #{tpu_custom_call.1} parent=5 // pred_check
        %p156 = pneg %p155
      $region14: #{tpu_custom_call.1} parent=5 // pred_check_branch
        %158 = sbr.rel (%p156) target = $region16
      $region15: #{tpu_custom_call.1} parent=5 // pred_region
        // Predicated region
        $region17: #{tpu_custom_call.1} parent=15 // pred_check
          %p159 = pneg %p52
        $region18: #{tpu_custom_call.1} parent=15 // pred_check_branch
          %161 = sbr.rel (%p159) target = $region20
        $region19: #{tpu_custom_call.1} parent=15 // pred_region
          %s162 = sand.u32 %s42, 1
          %s163 = scalar_lea.sflag [#allocation5], %s162
          %s164 = sand.u32 %s42, 1
          %s165 = smul.addr %s164, 8
          %s166 = scalar_lea.vmem [#allocation4], %s165
          %168 = vsyncadd %s163, 0
          %s169 = smul.addr %s25, 2
          %s170 = sadd.s32 %s26, %s169
          %s171 = smul.addr %s170, 8
          %s172 = scalar_lea.hbm %s0, %s171
          %s174 = sshll.u32 %s172, 4
          %s175 = int_to_ptr.hbm [resolvable:$true] %s174
          %s176 = sshll.u32 %s166, 4
          %s177 = int_to_ptr.vmem [resolvable:$true] %s176
          %179 = dma.hbm_to_vmem [thread:$0]  %s175, 128, %s177, %s163
        $region20: #{tpu_custom_call.1} parent=15 // pred_fallthru
          _
        // Predicated region
        $region21: #{tpu_custom_call.1} parent=15 // pred_check
          %p180 = pneg %p80
        $region22: #{tpu_custom_call.1} parent=15 // pred_check_branch
          %182 = sbr.rel (%p180) target = $region24
        $region23: #{tpu_custom_call.1} parent=15 // pred_region
          %s183 = sand.u32 %s18, 1
          %s184 = scalar_lea.sflag [#allocation8], %s183
          %s185 = sand.u32 %s70, 1
          %s186 = smul.addr %s185, 8
          %s187 = scalar_lea.vmem [#allocation7], %s186
          %189 = vsyncadd %s184, 0
          %s190 = smul.addr %s25, 2
          %s191 = sadd.s32 %s26, %s190
          %s192 = smul.addr %s191, 8
          %s193 = scalar_lea.hbm %s1, %s192
          %s195 = sshll.u32 %s193, 4
          %s196 = int_to_ptr.hbm [resolvable:$true] %s195
          %s197 = sshll.u32 %s187, 4
          %s198 = int_to_ptr.vmem [resolvable:$true] %s197
          %200 = dma.hbm_to_vmem [thread:$0]  %s196, 128, %s198, %s184
        $region24: #{tpu_custom_call.1} parent=15 // pred_fallthru
          _
        // Predicated region
        $region25: #{tpu_custom_call.1} parent=15 // pred_check
          %p201 = pneg %p108
        $region26: #{tpu_custom_call.1} parent=15 // pred_check_branch
          %203 = sbr.rel (%p201) target = $region28
        $region27: #{tpu_custom_call.1} parent=15 // pred_region
          %s204 = sand.u32 %s18, 1
          %s205 = scalar_lea.sflag [#allocation8], %s204
          %s206 = sand.u32 %s98, 1
          %s207 = smul.addr %s206, 8
          %s208 = scalar_lea.vmem [#allocation9], %s207
          %210 = vsyncadd %s205, 0
          %s211 = smul.addr %s25, 2
          %s212 = sadd.s32 %s26, %s211
          %s213 = smul.addr %s212, 8
          %s214 = scalar_lea.hbm %s2, %s213
          %s216 = sshll.u32 %s214, 4
          %s217 = int_to_ptr.hbm [resolvable:$true] %s216
          %s218 = sshll.u32 %s208, 4
          %s219 = int_to_ptr.vmem [resolvable:$true] %s218
          %221 = dma.hbm_to_vmem [thread:$0]  %s217, 128, %s219, %s205
        $region28: #{tpu_custom_call.1} parent=15 // pred_fallthru
          _
      $region16: #{tpu_custom_call.1} parent=5 // pred_fallthru
        _
      %p222 = scmp.le.s32.totalorder 1, %s18
      %p223 = scmp.lt.s32.totalorder %s18, 13
      %p224 = pnand %p222, %p223
      %p225 = pneg %p224
      // Predicated region
      $region29: #{tpu_custom_call.1} parent=5 // pred_check
        _
      $region30: #{tpu_custom_call.1} parent=5 // pred_check_branch
        %227 = sbr.rel (%p224) target = $region32
      $region31: #{tpu_custom_call.1} parent=5 // pred_region
        %s228 = ssub.s32 %s18, 1
        %s229 = sand.u32 %s45, 1
        %s230 = scalar_lea.sflag [#allocation5], %s229
        %s231 = sand.u32 %s45, 1
        %s232 = smul.addr %s231, 8
        %s233 = scalar_lea.vmem [#allocation4], %s232
        // Predicated region
        $region33: #{tpu_custom_call.1} parent=31 // pred_check
          %p234 = pneg %p58
        $region34: #{tpu_custom_call.1} parent=31 // pred_check_branch
          %236 = sbr.rel (%p234) target = $region36
        $region35: #{tpu_custom_call.1} parent=31 // pred_region
          %238 = dma.done %s230, 128
        $region36: #{tpu_custom_call.1} parent=31 // pred_fallthru
          _
        %s239 = sand.u32 %s23, 1
        %s240 = scalar_lea.sflag [#allocation8], %s239
        %s241 = sand.u32 %s73, 1
        %s242 = smul.addr %s241, 8
        %s243 = scalar_lea.vmem [#allocation7], %s242
        // Predicated region
        $region37: #{tpu_custom_call.1} parent=31 // pred_check
          %p244 = pneg %p86
        $region38: #{tpu_custom_call.1} parent=31 // pred_check_branch
          %246 = sbr.rel (%p244) target = $region40
        $region39: #{tpu_custom_call.1} parent=31 // pred_region
          %248 = dma.done %s240, 128
        $region40: #{tpu_custom_call.1} parent=31 // pred_fallthru
          _
        %s249 = sand.u32 %s23, 1
        %s250 = scalar_lea.sflag [#allocation8], %s249
        %s251 = sand.u32 %s101, 1
        %s252 = smul.addr %s251, 8
        %s253 = scalar_lea.vmem [#allocation9], %s252
        // Predicated region
        $region41: #{tpu_custom_call.1} parent=31 // pred_check
          %p254 = pneg %p114
        $region42: #{tpu_custom_call.1} parent=31 // pred_check_branch
          %256 = sbr.rel (%p254) target = $region44
        $region43: #{tpu_custom_call.1} parent=31 // pred_region
          %258 = dma.done %s250, 128
        $region44: #{tpu_custom_call.1} parent=31 // pred_fallthru
          _
        %s259 = sand.u32 %s45, 1
        %s260 = scalar_lea.sflag [#allocation5], %s259
        %s261 = sand.u32 %s45, 1
        %s262 = smul.addr %s261, 8
        %s263 = scalar_lea.vmem [#allocation4], %s262
        %p264 = pneg %p58
        %p265 = pneg %p55
        %s266 = sand.u32 %s23, 1
        %s267 = scalar_lea.sflag [#allocation8], %s266
        %s268 = sand.u32 %s73, 1
        %s269 = smul.addr %s268, 8
        %s270 = scalar_lea.vmem [#allocation7], %s269
        %p271 = pneg %p86
        %p272 = pneg %p83
        %s273 = sand.u32 %s23, 1
        %s274 = scalar_lea.sflag [#allocation8], %s273
        %s275 = sand.u32 %s101, 1
        %s276 = smul.addr %s275, 8
        %s277 = scalar_lea.vmem [#allocation9], %s276
        %p278 = pneg %p114
        %p279 = pneg %p111
        %p280 = pneg %p140
        %p281 = pneg %p137
        %s282 = sand.u32 %s127, 1
        %s283 = scalar_lea.sflag [#allocation6], %s282
        %s284 = sand.u32 %s127, 1
        %s285 = smul.addr %s284, 8
        %s286 = scalar_lea.vmem [#allocation10], %s285
        %v287 = vld [vmem:[%s233] sm:$0xff]
        %v288 = vld [vmem:[%s243] sm:$0xff]
        %v289 = vld [vmem:[%s253] sm:$0xff]
        %v290 = vsub.f32 %v287, %v288
        %v291 = vmul.f32 %v290, %v289
        %293 = vrot.lane.b32.xlu0 %v291, 126
        %v294 = vpop.permute.xlu0 %293
        %v296 = vsub.f32 %v291, %v294
        %v297 = vand.u32 2147483647, %v296
        %299 = vrot.lane.b32.xlu0 %v289, 126
        %v300 = vpop.permute.xlu0 %299
        %v302 = vmul.f32 %v289, %v300
        %v303 = vmul.f32 %v297, %v302
        %vm304 = vcmask 113664
        %v305 = vsel %vm304, %v303, 0.0
        %306 = vadd.xlane.f32.xlu0 %v305
        %v307 = vpop.xlane.xlu0 %306
        %v308 = vrot.slane %v307, 4
        %v309 = vadd.f32 %v307, %v308
        %v310 = vrot.slane %v309, 2
        %v311 = vadd.f32 %v309, %v310
        %v312 = vrot.slane %v311, 1
        %v313 = vadd.f32 %v311, %v312
        %s314 = vtos %v313
        %v315 = vrot.slane %v291, 2
        %v317 = vsub.f32 %v291, %v315
        %v318 = vand.u32 2147483647, %v317
        %v319 = vrot.slane %v289, 2
        %v321 = vmul.f32 %v289, %v319
        %v322 = vmul.f32 %v318, %v321
        %vm323 = vcmask 128000
        %v324 = vsel %vm323, %v322, 0.0
        %325 = vadd.xlane.f32.xlu0 %v324
        %v326 = vpop.xlane.xlu0 %325
        %v327 = vrot.slane %v326, 4
        %v328 = vadd.f32 %v326, %v327
        %v329 = vrot.slane %v328, 2
        %v330 = vadd.f32 %v328, %v329
        %v331 = vrot.slane %v330, 1
        %v332 = vadd.f32 %v330, %v331
        %s333 = vtos %v332
        %s334 = sadd.f32 %s314, %s333
        %vm335 = vcmask 130048
        %v336 = vsel %vm335, %v289, 0.0
        %337 = vadd.xlane.f32.xlu0 %v336
        %v338 = vpop.xlane.xlu0 %337
        %v339 = vrot.slane %v338, 4
        %v340 = vadd.f32 %v338, %v339
        %v341 = vrot.slane %v340, 2
        %v342 = vadd.f32 %v340, %v341
        %v343 = vrot.slane %v342, 1
        %v344 = vadd.f32 %v342, %v343
        %s345 = vtos %v344
        %p346 = scmp.eq.s32.totalorder %s28, 0
        // Predicated region
        $region45: #{tpu_custom_call.1} parent=31 // pred_check
          %p347 = pneg %p346
        $region46: #{tpu_custom_call.1} parent=31 // pred_check_branch
          %349 = sbr.rel (%p347) target = $region48
        $region47: #{tpu_custom_call.1} parent=31 // pred_region
          %350 = vst [vmem:[%s286] sm:$0xff] 0.0
        $region48: #{tpu_custom_call.1} parent=31 // pred_fallthru
          _
        %v351 = vld [vmem:[%s286] sm:$0xff]
        %v352 = vlaneseq
        %v353 = vand.u32 %v352, 127
        %v354 = vlaneseq
        %v355 = vshrl.u32 %v354, 7
        %vm356 = vcmp.eq.s32.totalorder %v355, 0
        %vm357 = vcmp.eq.s32.totalorder %v353, 0
        %vm358 = vmand %vm356, %vm357
        %v359 = vstv %s334
        %v360 = vsel %vm358, %v359, 0.0
        %vm361 = vcmp.eq.s32.totalorder %v353, 1
        %vm362 = vmand %vm356, %vm361
        %v363 = vstv %s345
        %v364 = vsel %vm362, %v363, %v360
        %v365 = vadd.f32 %v351, %v364
        %366 = vst [vmem:[%s286] sm:$0xff] %v365
        %p367 = scmp.gt.s32.totalorder %s28, 0
        // Predicated region
        $region49: #{tpu_custom_call.1} parent=31 // pred_check
          %p368 = pneg %p367
        $region50: #{tpu_custom_call.1} parent=31 // pred_check_branch
          %370 = sbr.rel (%p368) target = $region52
        $region51: #{tpu_custom_call.1} parent=31 // pred_region
          %v371 = vld [vmem:[#allocation2] sm:$0x3]
          %v372 = vsub.f32 %v371, %v291
          %v373 = vand.u32 2147483647, %v372
          %v374 = vld [vmem:[#allocation3] sm:$0x3]
          %v375 = vmul.f32 %v374, %v289
          %v376 = vld [vmem:[%s286] sm:$0xff]
          %v377 = vmul.f32 %v373, %v375
          %vm378 = vcmask 123904
          %v379 = vsel %vm378, %v377, 0.0
          %380 = vadd.xlane.f32.xlu0 %v379
          %v381 = vpop.xlane.xlu0 %380
          %v382 = vrot.slane %v381, 4
          %v383 = vadd.f32 %v381, %v382
          %v384 = vrot.slane %v383, 2
          %v385 = vadd.f32 %v383, %v384
          %v386 = vrot.slane %v385, 1
          %v387 = vadd.f32 %v385, %v386
          %s388 = vtos %v387
          %v389 = vstv %s388
          %v390 = vsel %vm358, %v389, 0.0
          %v391 = vsel %vm362, 0.0, %v390
          %v392 = vadd.f32 %v376, %v391
          %393 = vst [vmem:[%s286] sm:$0xff] %v392
        $region52: #{tpu_custom_call.1} parent=31 // pred_fallthru
          _
        %vm394 = vcmask 130054
        %395 = vst.msk [vmem:[#allocation2 - $0x6] sm:$0xc0] %vm394, %v291
        %396 = vst.msk [vmem:[#allocation3 - $0x6] sm:$0xc0] %vm394, %v289
        %s397 = sand.u32 %s127, 1
        %s398 = scalar_lea.sflag [#allocation6], %s397
        %s399 = sand.u32 %s127, 1
        %s400 = smul.addr %s399, 8
        %s401 = scalar_lea.vmem [#allocation10], %s400
        // Predicated region
        $region53: #{tpu_custom_call.1} parent=31 // pred_check
          %p402 = pneg %p137
        $region54: #{tpu_custom_call.1} parent=31 // pred_check_branch
          %404 = sbr.rel (%p402) target = $region56
        $region55: #{tpu_custom_call.1} parent=31 // pred_region
          %406 = vsyncadd %s398, 0
          %s407 = smul.addr %s27, 8
          %s408 = scalar_lea.hbm %s3, %s407
          %s410 = sshll.u32 %s401, 4
          %s411 = int_to_ptr.vmem [resolvable:$true] %s410
          %s412 = sshll.u32 %s408, 4
          %s413 = int_to_ptr.hbm [resolvable:$true] %s412
          %415 = dma.vmem_to_hbm [thread:$0]  %s411, 128, %s413, %s398
        $region56: #{tpu_custom_call.1} parent=31 // pred_fallthru
          _
      $region32: #{tpu_custom_call.1} parent=5 // pred_fallthru
        _
      %p416 = scmp.le.s32.totalorder 2, %s18
      // Predicated region
      $region57: #{tpu_custom_call.1} parent=5 // pred_check
        %p417 = pneg %p416
      $region58: #{tpu_custom_call.1} parent=5 // pred_check_branch
        %419 = sbr.rel (%p417) target = $region60
      $region59: #{tpu_custom_call.1} parent=5 // pred_region
        %s420 = ssub.s32 %s18, 2
        // Predicated region
        $region61: #{tpu_custom_call.1} parent=59 // pred_check
          %p421 = pneg %p143
        $region62: #{tpu_custom_call.1} parent=59 // pred_check_branch
          %423 = sbr.rel (%p421) target = $region64
        $region63: #{tpu_custom_call.1} parent=59 // pred_region
          %s424 = sand.u32 %s128, 1
          %s425 = scalar_lea.sflag [#allocation6], %s424
          %s426 = sand.u32 %s128, 1
          %s427 = smul.addr %s426, 8
          %s428 = scalar_lea.vmem [#allocation10], %s427
          %430 = dma.done %s425, 128
        $region64: #{tpu_custom_call.1} parent=59 // pred_fallthru
          _
      $region60: #{tpu_custom_call.1} parent=5 // pred_fallthru
        _
    $region6: #{tpu_custom_call.1} parent=1 // loop_footer
      %s22 = sadd.s32 1, %s18
    $region7: #{tpu_custom_call.1} parent=1 // loop_footer_branch
      %17 = sbr.rel target = $region3
    $region8: #{tpu_custom_call.1} parent=1 // loop_exit
      _
    %431 = vsyncpa [#allocation5], 1
    %s432 = scalar_lea.sflag [#allocation5], 1
    %433 = vsyncpa %s432, 1
    %434 = vsyncpa [#allocation8], 1
    %s435 = scalar_lea.sflag [#allocation8], 1
    %436 = vsyncpa %s435, 1
    %437 = vsyncpa [#allocation6], 1
    %s438 = scalar_lea.sflag [#allocation6], 1
    %439 = vsyncpa %s438, 1

</llo_original>
